<compile_context>
chip_gen: v7x
topology: tpu7x:2x2x1
jax: 0.10.0
libtpu: 0.0.40
codegen_flags: <defaults>
</compile_context>

<pallas_src>
import jax
import jax.numpy as jnp
from jax.experimental import pallas as pl
from jax.experimental.pallas import tpu as pltpu


_ALIGN = 16   # sublane alignment safe for both f32 (8) and bf16 (16) tiles
_TM_MAX = 1024


def _round_up(x, m):
    return ((x + m - 1) // m) * m


def _cdiv(a, b):
    return (a + b - 1) // b


def _vmem_capacity_bytes():
    """Physical VMEM per TensorCore (v7x: 64 MiB, v5e/v6e: 128 MiB)."""
    try:
        cap = int(pltpu.get_tpu_info().vmem_capacity_bytes)
        if cap > 0:
            return cap
    except Exception:
        pass
    try:
        if "v7" in jax.devices()[0].device_kind.lower():
            return 64 << 20
    except Exception:
        pass
    return 128 << 20


def _num_tensorcores_per_chip():
    """v7x has 2 TensorCores per chip; v5e/v5p/v6e expose 1 per Pallas call.

    Only used to decide whether to split the batch into >=2 tiles; a wrong
    answer is never a correctness issue, only a (small) perf one.
    """
    try:
        kind = jax.devices()[0].device_kind.lower()
    except Exception:
        return 1
    return 2 if "v7" in kind else 1


def _choose_batch_tiling(batch, in_dim, x_itemsize):
    """Pick (tm, nb, padded_batch): few, large, balanced batch tiles."""
    bpa = _round_up(max(batch, 1), _ALIGN)
    vmem_cap = _vmem_capacity_bytes()
    # Budget ~1/8 of VMEM for the double-buffered x tiles (the dominant buffer).
    x_budget = vmem_cap // 8
    tm_cap = (x_budget // max(1, 2 * in_dim * x_itemsize)) // _ALIGN * _ALIGN
    tm_cap = max(_ALIGN, min(_TM_MAX, tm_cap))
    nb = _cdiv(bpa, tm_cap)
    # v7x: keep at least two tiles so the 'parallel' batch axis feeds both
    # TensorCores, once there is enough batch to split.
    if _num_tensorcores_per_chip() >= 2 and nb < 2 and bpa >= 2 * _ALIGN:
        nb = 2
    tm = _round_up(_cdiv(bpa, nb), _ALIGN)   # balanced tiles -> minimal padding
    nb = _cdiv(bpa, tm)
    return tm, nb, tm * nb


def mlp_value_kernel(x_ref, w1_ref, b1_ref, w2_ref, b2_ref, wv_ref, bv_ref, o_ref):
    # x_ref : (TM, in_dim) raw obs dtype (the module's .float() cast lives here)
    # w1    : (in_dim, h1) bf16   b1 : (1, h1) f32
    # w2    : (h1, h2)     f32    b2 : (1, h2) f32
    # wv    : (1, h2)      f32    bv : (1, 1)  f32
    # o_ref : (1, TM)      f32  (lane-dense row of values for this batch tile)

    # Layer 1 (dominant matmul): native bf16 MXU path, f32 accumulation.
    x = x_ref[...].astype(jnp.bfloat16)
    h = jnp.dot(x, w1_ref[...], preferred_element_type=jnp.float32) + b1_ref[...]
    h = jnp.maximum(h, 0.0)

    # Layer 2 is <1% of FLOPs & bytes: keep it f32 for accuracy.
    h = jnp.dot(h, w2_ref[...], preferred_element_type=jnp.float32) + b2_ref[...]
    h = jnp.maximum(h, 0.0)

    # Value layer (h2 -> 1) on the VPU + XLU instead of an N=1 MXU matmul:
    # broadcast-multiply by the wv row, lane-reduce, store lane-dense (1, TM).
    v = jnp.sum(h * wv_ref[...], axis=-1)              # (TM,)
    o_ref[...] = v.reshape(1, -1) + bv_ref[...]        # (1, TM) + (1, 1)


def prepare_params(params):
    """One-time conversion of PyTorch-layout params into kernel layout.

    Done OUTSIDE the jitted forward so no convert/reshape ops are re-emitted
    on every call: w1 is stored bf16 (halves the largest weight DMA), biases
    become (1, n) rows, wv becomes a (1, h2) row for the VPU value layer.
    """
    return {
        "w1": jnp.asarray(params["w1"], jnp.bfloat16),
        "b1": jnp.asarray(params["b1"], jnp.float32).reshape(1, -1),
        "w2": jnp.asarray(params["w2"], jnp.float32),
        "b2": jnp.asarray(params["b2"], jnp.float32).reshape(1, -1),
        "wv": jnp.asarray(params["wv"], jnp.float32).reshape(1, -1),
        "bv": jnp.asarray(params["bv"], jnp.float32).reshape(1, 1),
    }


def mlp_value_forward(x_nchw, kparams):
    """Forward pass matching MLP_Value.forward.

    x_nchw  : (B, C, H, W), any float/int dtype (cast to float happens in-kernel)
    kparams : output of prepare_params()
    returns : (B, 1) float32
    """
    B = x_nchw.shape[0]
    x = x_nchw.reshape(B, -1)          # flatten only; no host-side dtype cast
    in_dim = x.shape[1]

    w1, b1 = kparams["w1"], kparams["b1"]
    w2, b2 = kparams["w2"], kparams["b2"]
    wv, bv = kparams["wv"], kparams["bv"]
    h1, h2 = w1.shape[1], w2.shape[1]

    tm, nb, bp = _choose_batch_tiling(B, in_dim, x.dtype.itemsize)

    if bp != B:
        # A pad copy is materialized anyway -> fuse the bf16 downcast into it
        # (halves the dominant x HBM stream).  If no pad were needed we would
        # NOT add a standalone cast (that would be an extra HBM round trip);
        # integer / bool observations always stream in their raw narrow dtype.
        if x.dtype == jnp.float32:
            x = x.astype(jnp.bfloat16)
        x = jnp.pad(x, ((0, bp - B), (0, 0)))

    x_itemsize = x.dtype.itemsize
    small_bytes = (b1.size + w2.size + b2.size + wv.size + bv.size) * 4
    vmem_need = (
        2 * tm * in_dim * x_itemsize                 # double-buffered x tiles
        + 2 * tm * 4                                 # double-buffered output rows
        + 2 * (w1.size * w1.dtype.itemsize + small_bytes)
        + 4 * tm * max(h1, h2) * 4                   # activation temporaries
    )
    vmem_limit = int(min(_vmem_capacity_bytes() // 2,
                         max(32 << 20, vmem_need + (8 << 20))))

    flops = 2 * bp * (in_dim * h1 + h1 * h2 + h2)
    bytes_accessed = (x.size * x_itemsize
                      + w1.size * w1.dtype.itemsize
                      + small_bytes
                      + bp * 4)

    grid_spec = pltpu.PrefetchScalarGridSpec(
        num_scalar_prefetch=0,
        grid=(nb,),
        in_specs=[
            pl.BlockSpec((tm, in_dim), lambda i: (i, 0)),   # x: tiled over batch
            pl.BlockSpec((in_dim, h1), lambda i: (0, 0)),   # weights / biases stay
            pl.BlockSpec((1, h1),      lambda i: (0, 0)),   # VMEM-resident across
            pl.BlockSpec((h1, h2),     lambda i: (0, 0)),   # the whole grid
            pl.BlockSpec((1, h2),      lambda i: (0, 0)),
            pl.BlockSpec((1, h2),      lambda i: (0, 0)),   # wv as a row
            pl.BlockSpec((1, 1),       lambda i: (0, 0)),
        ],
        # Lane-dense output: each grid step writes a (1, TM) row of values.
        out_specs=pl.BlockSpec((1, tm), lambda i: (0, i)),
    )

    out = pl.pallas_call(
        mlp_value_kernel,
        out_shape=jax.ShapeDtypeStruct((1, bp), jnp.float32),
        grid_spec=grid_spec,
        compiler_params=pltpu.CompilerParams(
            dimension_semantics=("parallel",),
            vmem_limit_bytes=vmem_limit),
        cost_estimate=pl.CostEstimate(
            flops=flops, transcendentals=0, bytes_accessed=bytes_accessed),
    )(x, w1, b1, w2, b2, wv, bv)

    # (1, bp) lane-dense rows -> (B, 1) column expected by the module.
    return out.reshape(bp, 1)[:B]


def init_params(key, in_dim, hidden=(32, 32)):
    """PyTorch-Linear-style init: U(-1/sqrt(fan_in), 1/sqrt(fan_in))."""
    h1, h2 = hidden
    k = jax.random.split(key, 6)

    def lin(kw, kb, fan_in, fan_out):
        bound = 1.0 / jnp.sqrt(jnp.float32(fan_in))
        w = jax.random.uniform(kw, (fan_in, fan_out), jnp.float32, -bound, bound)
        b = jax.random.uniform(kb, (fan_out,), jnp.float32, -bound, bound)
        return w, b

    w1, b1 = lin(k[0], k[1], in_dim, h1)
    w2, b2 = lin(k[2], k[3], h1, h2)
    wv, bv = lin(k[4], k[5], h2, 1)
    return {"w1": w1, "b1": b1, "w2": w2, "b2": b2, "wv": wv, "bv": bv}


def reference_forward(x_nchw, params):
    """Pure-JAX f32 reference of the PyTorch forward."""
    B = x_nchw.shape[0]
    x = x_nchw.astype(jnp.float32).reshape(B, -1)
    h = jnp.maximum(x @ params["w1"] + params["b1"], 0.0)
    h = jnp.maximum(h @ params["w2"] + params["b2"], 0.0)
    return h @ params["wv"] + params["bv"].reshape(1, -1)


if __name__ == "__main__":
    key = jax.random.PRNGKey(0)
    k_x, k_p = jax.random.split(key)

    # Small, module-consistent shapes: (B, C, H, W) = (2, 4, 16, 16) -> in_dim = 1024
    B, C, H, W = 2, 4, 16, 16
    in_dim = C * H * W
    hidden = (32, 32)

    x = jax.random.normal(k_x, (B, C, H, W), jnp.float32)
    params = init_params(k_p, in_dim, hidden)
    kparams = prepare_params(params)        # one-time: bf16 w1, row-shaped biases

    fwd = jax.jit(mlp_value_forward)
    v = jax.block_until_ready(fwd(x, kparams))

    v_ref = reference_forward(x, params)
    assert v.shape == (B, 1), v.shape
    # x / w1 go through bf16 on the MXU (f32 accumulation), so allow ~1e-2 drift.
    assert jnp.allclose(v, v_ref, atol=5e-2, rtol=5e-2), (v, v_ref)

    print("KERNEL_OK")
</pallas_src>

<mosaic_0001>
module attributes {stable_mosaic.version = 11 : i64} {
  func.func @mlp_value_kernel(%arg0: i32, %arg1: memref<16x1024xbf16, #tpu.memory_space<vmem>>, %arg2: memref<1024x32xbf16, #tpu.memory_space<vmem>>, %arg3: memref<1x32xf32, #tpu.memory_space<vmem>>, %arg4: memref<32x32xf32, #tpu.memory_space<vmem>>, %arg5: memref<1x32xf32, #tpu.memory_space<vmem>>, %arg6: memref<1x32xf32, #tpu.memory_space<vmem>>, %arg7: memref<1x1xf32, #tpu.memory_space<vmem>>, %arg8: memref<1x16xf32, #tpu.memory_space<vmem>>) attributes {dimension_semantics = [#tpu.dimension_semantics<parallel>], iteration_bounds = array<i64: 1>, scalar_prefetch = 0 : i64, scratch_operands = 0 : i64, tpu.core_type = #tpu.core_type<tc>, window_params = [{transform_indices = @transform_0, window_bounds = array<i64: 16, 1024>}, {pipeline_mode = #tpu.pipeline_mode<synchronous>, transform_indices = @transform_1, window_bounds = array<i64: 1024, 32>}, {pipeline_mode = #tpu.pipeline_mode<synchronous>, transform_indices = @transform_2, window_bounds = array<i64: 1, 32>}, {pipeline_mode = #tpu.pipeline_mode<synchronous>, transform_indices = @transform_3, window_bounds = array<i64: 32, 32>}, {pipeline_mode = #tpu.pipeline_mode<synchronous>, transform_indices = @transform_4, window_bounds = array<i64: 1, 32>}, {pipeline_mode = #tpu.pipeline_mode<synchronous>, transform_indices = @transform_5, window_bounds = array<i64: 1, 32>}, {pipeline_mode = #tpu.pipeline_mode<synchronous>, transform_indices = @transform_6, window_bounds = array<i64: 1, 1>}, {transform_indices = @transform_7, window_bounds = array<i64: 1, 16>}]} {
    %c0 = arith.constant 0 : index
    %c0_0 = arith.constant 0 : index
    %0 = vector.load %arg1[%c0, %c0_0] : memref<16x1024xbf16, #tpu.memory_space<vmem>>, vector<16x1024xbf16>
    %c0_1 = arith.constant 0 : index
    %c0_2 = arith.constant 0 : index
    %1 = vector.load %arg2[%c0_1, %c0_2] : memref<1024x32xbf16, #tpu.memory_space<vmem>>, vector<1024x32xbf16>
    %cst = arith.constant dense<0.000000e+00> : vector<16x32xf32>
    %2 = tpu.matmul %0, %1, %cst {dimension_numbers = #tpu.dot_dimension_numbers<[1], [0], [0], [1], [0, 0, 1, 1], [], []>} : vector<16x1024xbf16>, vector<1024x32xbf16>, vector<16x32xf32> -> vector<16x32xf32>
    %c0_3 = arith.constant 0 : index
    %c0_4 = arith.constant 0 : index
    %3 = vector.load %arg3[%c0_3, %c0_4] : memref<1x32xf32, #tpu.memory_space<vmem>>, vector<1x32xf32>
    %4 = vector.broadcast %3 : vector<1x32xf32> to vector<16x32xf32>
    %5 = arith.addf %2, %4 : vector<16x32xf32>
    %cst_5 = arith.constant 0.000000e+00 : f32
    %6 = vector.broadcast %cst_5 : f32 to vector<16x32xf32>
    %7 = arith.maximumf %5, %6 : vector<16x32xf32>
    %c0_6 = arith.constant 0 : index
    %c0_7 = arith.constant 0 : index
    %8 = vector.load %arg4[%c0_6, %c0_7] : memref<32x32xf32, #tpu.memory_space<vmem>>, vector<32x32xf32>
    %cst_8 = arith.constant dense<0.000000e+00> : vector<16x32xf32>
    %9 = tpu.matmul %7, %8, %cst_8 {dimension_numbers = #tpu.dot_dimension_numbers<[1], [0], [0], [1], [0, 0, 1, 1], [], []>} : vector<16x32xf32>, vector<32x32xf32>, vector<16x32xf32> -> vector<16x32xf32>
    %c0_9 = arith.constant 0 : index
    %c0_10 = arith.constant 0 : index
    %10 = vector.load %arg5[%c0_9, %c0_10] : memref<1x32xf32, #tpu.memory_space<vmem>>, vector<1x32xf32>
    %11 = vector.broadcast %10 : vector<1x32xf32> to vector<16x32xf32>
    %12 = arith.addf %9, %11 : vector<16x32xf32>
    %cst_11 = arith.constant 0.000000e+00 : f32
    %13 = vector.broadcast %cst_11 : f32 to vector<16x32xf32>
    %14 = arith.maximumf %12, %13 : vector<16x32xf32>
    %c0_12 = arith.constant 0 : index
    %c0_13 = arith.constant 0 : index
    %15 = vector.load %arg6[%c0_12, %c0_13] : memref<1x32xf32, #tpu.memory_space<vmem>>, vector<1x32xf32>
    %16 = vector.broadcast %15 : vector<1x32xf32> to vector<16x32xf32>
    %17 = arith.mulf %14, %16 : vector<16x32xf32>
    %cst_14 = arith.constant dense<0.000000e+00> : vector<16xf32>
    %18 = vector.multi_reduction <add>, %17, %cst_14 [1] : vector<16x32xf32> to vector<16xf32>
    %19 = vector.shape_cast %18 : vector<16xf32> to vector<1x16xf32>
    %c0_15 = arith.constant 0 : index
    %c0_16 = arith.constant 0 : index
    %20 = vector.load %arg7[%c0_15, %c0_16] : memref<1x1xf32, #tpu.memory_space<vmem>>, vector<1x1xf32>
    %21 = vector.broadcast %20 : vector<1x1xf32> to vector<1x16xf32>
    %22 = arith.addf %19, %21 : vector<1x16xf32>
    %c0_17 = arith.constant 0 : index
    %c0_18 = arith.constant 0 : index
    %23 = vector.load %arg8[%c0_17, %c0_18] : memref<1x16xf32, #tpu.memory_space<vmem>>, vector<1x16xf32>
    tpu.vector_store %arg8[%c0_17, %c0_18], %22 {strides = array<i32>} : memref<1x16xf32, #tpu.memory_space<vmem>>, vector<1x16xf32>,
    return
  }
  func.func @transform_0(%arg0: i32) -> (i32, i32) {
    %c0_i32 = arith.constant 0 : i32
    %c0_i32_0 = arith.constant 0 : i32
    return %arg0, %c0_i32 : i32, i32
  }
  func.func @transform_1(%arg0: i32) -> (i32, i32) {
    %c0_i32 = arith.constant 0 : i32
    %c0_i32_0 = arith.constant 0 : i32
    %c0_i32_1 = arith.constant 0 : i32
    return %c0_i32, %c0_i32_0 : i32, i32
  }
  func.func @transform_2(%arg0: i32) -> (i32, i32) {
    %c0_i32 = arith.constant 0 : i32
    %c0_i32_0 = arith.constant 0 : i32
    %c0_i32_1 = arith.constant 0 : i32
    return %c0_i32, %c0_i32_0 : i32, i32
  }
  func.func @transform_3(%arg0: i32) -> (i32, i32) {
    %c0_i32 = arith.constant 0 : i32
    %c0_i32_0 = arith.constant 0 : i32
    %c0_i32_1 = arith.constant 0 : i32
    return %c0_i32, %c0_i32_0 : i32, i32
  }
  func.func @transform_4(%arg0: i32) -> (i32, i32) {
    %c0_i32 = arith.constant 0 : i32
    %c0_i32_0 = arith.constant 0 : i32
    %c0_i32_1 = arith.constant 0 : i32
    return %c0_i32, %c0_i32_0 : i32, i32
  }
  func.func @transform_5(%arg0: i32) -> (i32, i32) {
    %c0_i32 = arith.constant 0 : i32
    %c0_i32_0 = arith.constant 0 : i32
    %c0_i32_1 = arith.constant 0 : i32
    return %c0_i32, %c0_i32_0 : i32, i32
  }
  func.func @transform_6(%arg0: i32) -> (i32, i32) {
    %c0_i32 = arith.constant 0 : i32
    %c0_i32_0 = arith.constant 0 : i32
    %c0_i32_1 = arith.constant 0 : i32
    return %c0_i32, %c0_i32_0 : i32, i32
  }
  func.func @transform_7(%arg0: i32) -> (i32, i32) {
    %c0_i32 = arith.constant 0 : i32
    %c0_i32_0 = arith.constant 0 : i32
    return %c0_i32, %arg0 : i32, i32
  }
}

</mosaic_0001>

<llo_original>
// kernel: mlp_value_forward.1
$region0: #{mlp_value_forward.1}
  #allocation0 [shape = 'u32[]', space=smem, size = 0x4, offset = 0x4, fixed_abs, tag = 'smem constant byte address 0x4 - core index']
  #allocation1 [shape = 'u32[144,128]{1,0:T(1,128)}', space=vmem, size = 0x12000, scoped, tag = 'internal scratch']
  #allocation2 [shape = 'f32[1,1]{1,0:T(1,128)S(1)}', space=vmem, size = 0x200, scoped, tag = 'scoped memory for mlp_value_forward.1']
  %s0 = inlined_call_operand.vmem [shape: bf16[16,1024], index: 0, kind: input, shape index: {}]
  %s1 = inlined_call_operand.vmem [shape: bf16[1024,32], index: 1, kind: input, shape index: {}]
  %s2 = inlined_call_operand.vmem [shape: f32[1,32], index: 2, kind: input, shape index: {}]
  %s3 = inlined_call_operand.vmem [shape: f32[32,32], index: 3, kind: input, shape index: {}]
  %s4 = inlined_call_operand.vmem [shape: f32[1,32], index: 4, kind: input, shape index: {}]
  %s5 = inlined_call_operand.vmem [shape: f32[1,32], index: 5, kind: input, shape index: {}]
  %s6 = inlined_call_operand.<no memory space> [shape: f32[1,1], index: 6, kind: input, shape index: {}]
  %s7 = inlined_call_operand.vmem [shape: f32[1,16], index: 7, kind: output, shape index: {}]
  %s8 = sld [smem:[#allocation0]]
  $region38: #{mlp_value_forward.1} parent=0
    _
  %s10 = ssub.s32 1, %s8
  %s11 = scalar_select 0, %s10, %s8
  %v12 = vstv %s6
  %13 = vst [vmem:[#allocation2] sm:$0x1] %v12
  // Predicated region
  $region2: #{mlp_value_forward.1} parent=0 // pred_check
    _
  $region3: #{mlp_value_forward.1} parent=0 // pred_check_branch
    %15 = sbr.rel (0) target = $region5
  $region4: #{mlp_value_forward.1} parent=0 // pred_region
    _
  $region5: #{mlp_value_forward.1} parent=0 // pred_fallthru
    _
  // Predicated region
  $region6: #{mlp_value_forward.1} parent=0 // pred_check
    _
  $region7: #{mlp_value_forward.1} parent=0 // pred_check_branch
    %17 = sbr.rel (0) target = $region9
  $region8: #{mlp_value_forward.1} parent=0 // pred_region
    _
  $region9: #{mlp_value_forward.1} parent=0 // pred_fallthru
    _
  // Predicated region
  $region10: #{mlp_value_forward.1} parent=0 // pred_check
    _
  $region11: #{mlp_value_forward.1} parent=0 // pred_check_branch
    %19 = sbr.rel (0) target = $region13
  $region12: #{mlp_value_forward.1} parent=0 // pred_region
    _
  $region13: #{mlp_value_forward.1} parent=0 // pred_fallthru
    _
  // Predicated region
  $region14: #{mlp_value_forward.1} parent=0 // pred_check
    _
  $region15: #{mlp_value_forward.1} parent=0 // pred_check_branch
    %21 = sbr.rel (0) target = $region17
  $region16: #{mlp_value_forward.1} parent=0 // pred_region
    _
  $region17: #{mlp_value_forward.1} parent=0 // pred_fallthru
    _
  // Predicated region
  $region18: #{mlp_value_forward.1} parent=0 // pred_check
    _
  $region19: #{mlp_value_forward.1} parent=0 // pred_check_branch
    %23 = sbr.rel (0) target = $region21
  $region20: #{mlp_value_forward.1} parent=0 // pred_region
    _
  $region21: #{mlp_value_forward.1} parent=0 // pred_fallthru
    _
  // Predicated region
  $region22: #{mlp_value_forward.1} parent=0 // pred_check
    _
  $region23: #{mlp_value_forward.1} parent=0 // pred_check_branch
    %25 = sbr.rel (0) target = $region25
  $region24: #{mlp_value_forward.1} parent=0 // pred_region
    _
  $region25: #{mlp_value_forward.1} parent=0 // pred_fallthru
    _
  // Predicated region
  $region26: #{mlp_value_forward.1} parent=0 // pred_check
    _
  $region27: #{mlp_value_forward.1} parent=0 // pred_check_branch
    %27 = sbr.rel (0) target = $region29
  $region28: #{mlp_value_forward.1} parent=0 // pred_region
    _
  $region29: #{mlp_value_forward.1} parent=0 // pred_fallthru
    _
  %v29 = vld [vmem:[%s0] sm:$0xff]
  %v30 = vld [vmem:[%s0 + $0x8] sm:$0xff]
  %v31 = vld [vmem:[%s0 + $0x10] sm:$0xff]
  %v32 = vld [vmem:[%s0 + $0x18] sm:$0xff]
  %v33 = vld [vmem:[%s0 + $0x20] sm:$0xff]
  %v34 = vld [vmem:[%s0 + $0x28] sm:$0xff]
  %v35 = vld [vmem:[%s0 + $0x30] sm:$0xff]
  %v36 = vld [vmem:[%s0 + $0x38] sm:$0xff]
  %v37 = vld [vmem:[%s1] sm:$0xf]
  %v38 = vld [vmem:[%s1 + $0x4] sm:$0xf]
  %v39 = vld [vmem:[%s1 + $0x8] sm:$0xf]
  %v40 = vld [vmem:[%s1 + $0xc] sm:$0xf]
  %v41 = vld [vmem:[%s1 + $0x10] sm:$0xf]
  %v42 = vld [vmem:[%s1 + $0x14] sm:$0xf]
  %v43 = vld [vmem:[%s1 + $0x18] sm:$0xf]
  %v44 = vld [vmem:[%s1 + $0x1c] sm:$0xf]
  %v45 = vld [vmem:[%s1 + $0x20] sm:$0xf]
  %v46 = vld [vmem:[%s1 + $0x24] sm:$0xf]
  %v47 = vld [vmem:[%s1 + $0x28] sm:$0xf]
  %v48 = vld [vmem:[%s1 + $0x2c] sm:$0xf]
  %v49 = vld [vmem:[%s1 + $0x30] sm:$0xf]
  %v50 = vld [vmem:[%s1 + $0x34] sm:$0xf]
  %v51 = vld [vmem:[%s1 + $0x38] sm:$0xf]
  %v52 = vld [vmem:[%s1 + $0x3c] sm:$0xf]
  %v53 = vld [vmem:[%s1 + $0x40] sm:$0xf]
  %v54 = vld [vmem:[%s1 + $0x44] sm:$0xf]
  %v55 = vld [vmem:[%s1 + $0x48] sm:$0xf]
  %v56 = vld [vmem:[%s1 + $0x4c] sm:$0xf]
  %v57 = vld [vmem:[%s1 + $0x50] sm:$0xf]
  %v58 = vld [vmem:[%s1 + $0x54] sm:$0xf]
  %v59 = vld [vmem:[%s1 + $0x58] sm:$0xf]
  %v60 = vld [vmem:[%s1 + $0x5c] sm:$0xf]
  %v61 = vld [vmem:[%s1 + $0x60] sm:$0xf]
  %v62 = vld [vmem:[%s1 + $0x64] sm:$0xf]
  %v63 = vld [vmem:[%s1 + $0x68] sm:$0xf]
  %v64 = vld [vmem:[%s1 + $0x6c] sm:$0xf]
  %v65 = vld [vmem:[%s1 + $0x70] sm:$0xf]
  %v66 = vld [vmem:[%s1 + $0x74] sm:$0xf]
  %v67 = vld [vmem:[%s1 + $0x78] sm:$0xf]
  %v68 = vld [vmem:[%s1 + $0x7c] sm:$0xf]
  %v69 = vld [vmem:[%s1 + $0x80] sm:$0xf]
  %v70 = vld [vmem:[%s1 + $0x84] sm:$0xf]
  %v71 = vld [vmem:[%s1 + $0x88] sm:$0xf]
  %v72 = vld [vmem:[%s1 + $0x8c] sm:$0xf]
  %v73 = vld [vmem:[%s1 + $0x90] sm:$0xf]
  %v74 = vld [vmem:[%s1 + $0x94] sm:$0xf]
  %v75 = vld [vmem:[%s1 + $0x98] sm:$0xf]
  %v76 = vld [vmem:[%s1 + $0x9c] sm:$0xf]
  %v77 = vld [vmem:[%s1 + $0xa0] sm:$0xf]
  %v78 = vld [vmem:[%s1 + $0xa4] sm:$0xf]
  %v79 = vld [vmem:[%s1 + $0xa8] sm:$0xf]
  %v80 = vld [vmem:[%s1 + $0xac] sm:$0xf]
  %v81 = vld [vmem:[%s1 + $0xb0] sm:$0xf]
  %v82 = vld [vmem:[%s1 + $0xb4] sm:$0xf]
  %v83 = vld [vmem:[%s1 + $0xb8] sm:$0xf]
  %v84 = vld [vmem:[%s1 + $0xbc] sm:$0xf]
  %v85 = vld [vmem:[%s1 + $0xc0] sm:$0xf]
  %v86 = vld [vmem:[%s1 + $0xc4] sm:$0xf]
  %v87 = vld [vmem:[%s1 + $0xc8] sm:$0xf]
  %v88 = vld [vmem:[%s1 + $0xcc] sm:$0xf]
  %v89 = vld [vmem:[%s1 + $0xd0] sm:$0xf]
  %v90 = vld [vmem:[%s1 + $0xd4] sm:$0xf]
  %v91 = vld [vmem:[%s1 + $0xd8] sm:$0xf]
  %v92 = vld [vmem:[%s1 + $0xdc] sm:$0xf]
  %v93 = vld [vmem:[%s1 + $0xe0] sm:$0xf]
  %v94 = vld [vmem:[%s1 + $0xe4] sm:$0xf]
  %v95 = vld [vmem:[%s1 + $0xe8] sm:$0xf]
  %v96 = vld [vmem:[%s1 + $0xec] sm:$0xf]
  %v97 = vld [vmem:[%s1 + $0xf0] sm:$0xf]
  %v98 = vld [vmem:[%s1 + $0xf4] sm:$0xf]
  %v99 = vld [vmem:[%s1 + $0xf8] sm:$0xf]
  %v100 = vld [vmem:[%s1 + $0xfc] sm:$0xf]
  %v101 = vld [vmem:[%s1 + $0x100] sm:$0xf]
  %v102 = vld [vmem:[%s1 + $0x104] sm:$0xf]
  %v103 = vld [vmem:[%s1 + $0x108] sm:$0xf]
  %v104 = vld [vmem:[%s1 + $0x10c] sm:$0xf]
  %v105 = vld [vmem:[%s1 + $0x110] sm:$0xf]
  %v106 = vld [vmem:[%s1 + $0x114] sm:$0xf]
  %v107 = vld [vmem:[%s1 + $0x118] sm:$0xf]
  %v108 = vld [vmem:[%s1 + $0x11c] sm:$0xf]
  %v109 = vld [vmem:[%s1 + $0x120] sm:$0xf]
  %v110 = vld [vmem:[%s1 + $0x124] sm:$0xf]
  %v111 = vld [vmem:[%s1 + $0x128] sm:$0xf]
  %v112 = vld [vmem:[%s1 + $0x12c] sm:$0xf]
  %v113 = vld [vmem:[%s1 + $0x130] sm:$0xf]
  %v114 = vld [vmem:[%s1 + $0x134] sm:$0xf]
  %v115 = vld [vmem:[%s1 + $0x138] sm:$0xf]
  %v116 = vld [vmem:[%s1 + $0x13c] sm:$0xf]
  %v117 = vld [vmem:[%s1 + $0x140] sm:$0xf]
  %v118 = vld [vmem:[%s1 + $0x144] sm:$0xf]
  %v119 = vld [vmem:[%s1 + $0x148] sm:$0xf]
  %v120 = vld [vmem:[%s1 + $0x14c] sm:$0xf]
  %v121 = vld [vmem:[%s1 + $0x150] sm:$0xf]
  %v122 = vld [vmem:[%s1 + $0x154] sm:$0xf]
  %v123 = vld [vmem:[%s1 + $0x158] sm:$0xf]
  %v124 = vld [vmem:[%s1 + $0x15c] sm:$0xf]
  %v125 = vld [vmem:[%s1 + $0x160] sm:$0xf]
  %v126 = vld [vmem:[%s1 + $0x164] sm:$0xf]
  %v127 = vld [vmem:[%s1 + $0x168] sm:$0xf]
  %v128 = vld [vmem:[%s1 + $0x16c] sm:$0xf]
  %v129 = vld [vmem:[%s1 + $0x170] sm:$0xf]
  %v130 = vld [vmem:[%s1 + $0x174] sm:$0xf]
  %v131 = vld [vmem:[%s1 + $0x178] sm:$0xf]
  %v132 = vld [vmem:[%s1 + $0x17c] sm:$0xf]
  %v133 = vld [vmem:[%s1 + $0x180] sm:$0xf]
  %v134 = vld [vmem:[%s1 + $0x184] sm:$0xf]
  %v135 = vld [vmem:[%s1 + $0x188] sm:$0xf]
  %v136 = vld [vmem:[%s1 + $0x18c] sm:$0xf]
  %v137 = vld [vmem:[%s1 + $0x190] sm:$0xf]
  %v138 = vld [vmem:[%s1 + $0x194] sm:$0xf]
  %v139 = vld [vmem:[%s1 + $0x198] sm:$0xf]
  %v140 = vld [vmem:[%s1 + $0x19c] sm:$0xf]
  %v141 = vld [vmem:[%s1 + $0x1a0] sm:$0xf]
  %v142 = vld [vmem:[%s1 + $0x1a4] sm:$0xf]
  %v143 = vld [vmem:[%s1 + $0x1a8] sm:$0xf]
  %v144 = vld [vmem:[%s1 + $0x1ac] sm:$0xf]
  %v145 = vld [vmem:[%s1 + $0x1b0] sm:$0xf]
  %v146 = vld [vmem:[%s1 + $0x1b4] sm:$0xf]
  %v147 = vld [vmem:[%s1 + $0x1b8] sm:$0xf]
  %v148 = vld [vmem:[%s1 + $0x1bc] sm:$0xf]
  %v149 = vld [vmem:[%s1 + $0x1c0] sm:$0xf]
  %v150 = vld [vmem:[%s1 + $0x1c4] sm:$0xf]
  %v151 = vld [vmem:[%s1 + $0x1c8] sm:$0xf]
  %v152 = vld [vmem:[%s1 + $0x1cc] sm:$0xf]
  %v153 = vld [vmem:[%s1 + $0x1d0] sm:$0xf]
  %v154 = vld [vmem:[%s1 + $0x1d4] sm:$0xf]
  %v155 = vld [vmem:[%s1 + $0x1d8] sm:$0xf]
  %v156 = vld [vmem:[%s1 + $0x1dc] sm:$0xf]
  %v157 = vld [vmem:[%s1 + $0x1e0] sm:$0xf]
  %v158 = vld [vmem:[%s1 + $0x1e4] sm:$0xf]
  %v159 = vld [vmem:[%s1 + $0x1e8] sm:$0xf]
  %v160 = vld [vmem:[%s1 + $0x1ec] sm:$0xf]
  %v161 = vld [vmem:[%s1 + $0x1f0] sm:$0xf]
  %v162 = vld [vmem:[%s1 + $0x1f4] sm:$0xf]
  %v163 = vld [vmem:[%s1 + $0x1f8] sm:$0xf]
  %v164 = vld [vmem:[%s1 + $0x1fc] sm:$0xf]
  %v165 = vld [vmem:[%s2] sm:$0x1]
  %v167 = vlaneseq
  %v168 = vshrl.u32 %v167, 7
  %v169 = vsub.s32 0, %v168
  %v170 = vrot.slane %v165, %v169
  %v180 = vunpack.c.l.b16 %v29
  %v181 = vunpack.c.h.b16 %v29
  %v182 = vunpack.c.l.b16 %v30
  %v183 = vunpack.c.h.b16 %v30
  %v184 = vunpack.c.l.b16 %v31
  %v185 = vunpack.c.h.b16 %v31
  %v186 = vunpack.c.l.b16 %v32
  %v187 = vunpack.c.h.b16 %v32
  %v188 = vunpack.c.l.b16 %v33
  %v189 = vunpack.c.h.b16 %v33
  %v190 = vunpack.c.l.b16 %v34
  %v191 = vunpack.c.h.b16 %v34
  %v192 = vunpack.c.l.b16 %v35
  %v193 = vunpack.c.h.b16 %v35
  %v194 = vunpack.c.l.b16 %v36
  %v195 = vunpack.c.h.b16 %v36
  %v196 = vpack.c.b16 %v188, %v180
  %v197 = vpack.c.b16 %v189, %v181
  %v198 = vpack.c.b16 %v190, %v182
  %v199 = vpack.c.b16 %v191, %v183
  %v200 = vpack.c.b16 %v192, %v184
  %v201 = vpack.c.b16 %v193, %v185
  %v202 = vpack.c.b16 %v194, %v186
  %v203 = vpack.c.b16 %v195, %v187
  %v340 = vunpack.c.l.b16 %v37
  %v341 = vunpack.c.l.b16 %v38
  %v342 = vunpack.c.l.b16 %v39
  %v343 = vunpack.c.l.b16 %v40
  %v344 = vunpack.c.l.b16 %v41
  %v345 = vunpack.c.l.b16 %v42
  %v346 = vunpack.c.l.b16 %v43
  %v347 = vunpack.c.l.b16 %v44
  %v348 = vunpack.c.l.b16 %v45
  %v349 = vunpack.c.l.b16 %v46
  %v350 = vunpack.c.l.b16 %v47
  %v351 = vunpack.c.l.b16 %v48
  %v352 = vunpack.c.l.b16 %v49
  %v353 = vunpack.c.l.b16 %v50
  %v354 = vunpack.c.l.b16 %v51
  %v355 = vunpack.c.l.b16 %v52
  %v356 = vunpack.c.l.b16 %v53
  %v357 = vunpack.c.l.b16 %v54
  %v358 = vunpack.c.l.b16 %v55
  %v359 = vunpack.c.l.b16 %v56
  %v360 = vunpack.c.l.b16 %v57
  %v361 = vunpack.c.l.b16 %v58
  %v362 = vunpack.c.l.b16 %v59
  %v363 = vunpack.c.l.b16 %v60
  %v364 = vunpack.c.l.b16 %v61
  %v365 = vunpack.c.l.b16 %v62
  %v366 = vunpack.c.l.b16 %v63
  %v367 = vunpack.c.l.b16 %v64
  %v368 = vunpack.c.l.b16 %v65
  %v369 = vunpack.c.l.b16 %v66
  %v370 = vunpack.c.l.b16 %v67
  %v371 = vunpack.c.l.b16 %v68
  %v372 = vunpack.c.l.b16 %v69
  %v373 = vunpack.c.l.b16 %v70
  %v374 = vunpack.c.l.b16 %v71
  %v375 = vunpack.c.l.b16 %v72
  %v376 = vunpack.c.l.b16 %v73
  %v377 = vunpack.c.l.b16 %v74
  %v378 = vunpack.c.l.b16 %v75
  %v379 = vunpack.c.l.b16 %v76
  %v380 = vunpack.c.l.b16 %v77
  %v381 = vunpack.c.l.b16 %v78
  %v382 = vunpack.c.l.b16 %v79
  %v383 = vunpack.c.l.b16 %v80
  %v384 = vunpack.c.l.b16 %v81
  %v385 = vunpack.c.l.b16 %v82
  %v386 = vunpack.c.l.b16 %v83
  %v387 = vunpack.c.l.b16 %v84
  %v388 = vunpack.c.l.b16 %v85
  %v389 = vunpack.c.l.b16 %v86
  %v390 = vunpack.c.l.b16 %v87
  %v391 = vunpack.c.l.b16 %v88
  %v392 = vunpack.c.l.b16 %v89
  %v393 = vunpack.c.l.b16 %v90
  %v394 = vunpack.c.l.b16 %v91
  %v395 = vunpack.c.l.b16 %v92
  %v396 = vunpack.c.l.b16 %v93
  %v397 = vunpack.c.l.b16 %v94
  %v398 = vunpack.c.l.b16 %v95
  %v399 = vunpack.c.l.b16 %v96
  %v400 = vunpack.c.l.b16 %v97
  %v401 = vunpack.c.l.b16 %v98
  %v402 = vunpack.c.l.b16 %v99
  %v403 = vunpack.c.l.b16 %v100
  %v404 = vunpack.c.l.b16 %v101
  %v405 = vunpack.c.l.b16 %v102
  %v406 = vunpack.c.l.b16 %v103
  %v407 = vunpack.c.l.b16 %v104
  %v408 = vunpack.c.l.b16 %v105
  %v409 = vunpack.c.l.b16 %v106
  %v410 = vunpack.c.l.b16 %v107
  %v411 = vunpack.c.l.b16 %v108
  %v412 = vunpack.c.l.b16 %v109
  %v413 = vunpack.c.l.b16 %v110
  %v414 = vunpack.c.l.b16 %v111
  %v415 = vunpack.c.l.b16 %v112
  %v416 = vunpack.c.l.b16 %v113
  %v417 = vunpack.c.l.b16 %v114
  %v418 = vunpack.c.l.b16 %v115
  %v419 = vunpack.c.l.b16 %v116
  %v420 = vunpack.c.l.b16 %v117
  %v421 = vunpack.c.l.b16 %v118
  %v422 = vunpack.c.l.b16 %v119
  %v423 = vunpack.c.l.b16 %v120
  %v424 = vunpack.c.l.b16 %v121
  %v425 = vunpack.c.l.b16 %v122
  %v426 = vunpack.c.l.b16 %v123
  %v427 = vunpack.c.l.b16 %v124
  %v428 = vunpack.c.l.b16 %v125
  %v429 = vunpack.c.l.b16 %v126
  %v430 = vunpack.c.l.b16 %v127
  %v431 = vunpack.c.l.b16 %v128
  %v432 = vunpack.c.l.b16 %v129
  %v433 = vunpack.c.l.b16 %v130
  %v434 = vunpack.c.l.b16 %v131
  %v435 = vunpack.c.l.b16 %v132
  %v436 = vunpack.c.l.b16 %v133
  %v437 = vunpack.c.l.b16 %v134
  %v438 = vunpack.c.l.b16 %v135
  %v439 = vunpack.c.l.b16 %v136
  %v440 = vunpack.c.l.b16 %v137
  %v441 = vunpack.c.l.b16 %v138
  %v442 = vunpack.c.l.b16 %v139
  %v443 = vunpack.c.l.b16 %v140
  %v444 = vunpack.c.l.b16 %v141
  %v445 = vunpack.c.l.b16 %v142
  %v446 = vunpack.c.l.b16 %v143
  %v447 = vunpack.c.l.b16 %v144
  %v448 = vunpack.c.l.b16 %v145
  %v449 = vunpack.c.l.b16 %v146
  %v450 = vunpack.c.l.b16 %v147
  %v451 = vunpack.c.l.b16 %v148
  %v452 = vunpack.c.l.b16 %v149
  %v453 = vunpack.c.l.b16 %v150
  %v454 = vunpack.c.l.b16 %v151
  %v455 = vunpack.c.l.b16 %v152
  %v456 = vunpack.c.l.b16 %v153
  %v457 = vunpack.c.l.b16 %v154
  %v458 = vunpack.c.l.b16 %v155
  %v459 = vunpack.c.l.b16 %v156
  %v460 = vunpack.c.l.b16 %v157
  %v461 = vunpack.c.l.b16 %v158
  %v462 = vunpack.c.l.b16 %v159
  %v463 = vunpack.c.l.b16 %v160
  %v464 = vunpack.c.l.b16 %v161
  %v465 = vunpack.c.l.b16 %v162
  %v466 = vunpack.c.l.b16 %v163
  %v467 = vunpack.c.l.b16 %v164
  %v468 = vpack.c.b16 %v341, %v340
  %v469 = vpack.c.b16 %v343, %v342
  %v470 = vpack.c.b16 %v345, %v344
  %v471 = vpack.c.b16 %v347, %v346
  %v472 = vpack.c.b16 %v349, %v348
  %v473 = vpack.c.b16 %v351, %v350
  %v474 = vpack.c.b16 %v353, %v352
  %v475 = vpack.c.b16 %v355, %v354
  %v476 = vpack.c.b16 %v357, %v356
  %v477 = vpack.c.b16 %v359, %v358
  %v478 = vpack.c.b16 %v361, %v360
  %v479 = vpack.c.b16 %v363, %v362
  %v480 = vpack.c.b16 %v365, %v364
  %v481 = vpack.c.b16 %v367, %v366
  %v482 = vpack.c.b16 %v369, %v368
  %v483 = vpack.c.b16 %v371, %v370
  %v484 = vpack.c.b16 %v373, %v372
  %v485 = vpack.c.b16 %v375, %v374
  %v486 = vpack.c.b16 %v377, %v376
  %v487 = vpack.c.b16 %v379, %v378
  %v488 = vpack.c.b16 %v381, %v380
  %v489 = vpack.c.b16 %v383, %v382
  %v490 = vpack.c.b16 %v385, %v384
  %v491 = vpack.c.b16 %v387, %v386
  %v492 = vpack.c.b16 %v389, %v388
  %v493 = vpack.c.b16 %v391, %v390
  %v494 = vpack.c.b16 %v393, %v392
  %v495 = vpack.c.b16 %v395, %v394
  %v496 = vpack.c.b16 %v397, %v396
  %v497 = vpack.c.b16 %v399, %v398
  %v498 = vpack.c.b16 %v401, %v400
  %v499 = vpack.c.b16 %v403, %v402
  %v500 = vpack.c.b16 %v405, %v404
  %v501 = vpack.c.b16 %v407, %v406
  %v502 = vpack.c.b16 %v409, %v408
  %v503 = vpack.c.b16 %v411, %v410
  %v504 = vpack.c.b16 %v413, %v412
  %v505 = vpack.c.b16 %v415, %v414
  %v506 = vpack.c.b16 %v417, %v416
  %v507 = vpack.c.b16 %v419, %v418
  %v508 = vpack.c.b16 %v421, %v420
  %v509 = vpack.c.b16 %v423, %v422
  %v510 = vpack.c.b16 %v425, %v424
  %v511 = vpack.c.b16 %v427, %v426
  %v512 = vpack.c.b16 %v429, %v428
  %v513 = vpack.c.b16 %v431, %v430
  %v514 = vpack.c.b16 %v433, %v432
  %v515 = vpack.c.b16 %v435, %v434
  %v516 = vpack.c.b16 %v437, %v436
  %v517 = vpack.c.b16 %v439, %v438
  %v518 = vpack.c.b16 %v441, %v440
  %v519 = vpack.c.b16 %v443, %v442
  %v520 = vpack.c.b16 %v445, %v444
  %v521 = vpack.c.b16 %v447, %v446
  %v522 = vpack.c.b16 %v449, %v448
  %v523 = vpack.c.b16 %v451, %v450
  %v524 = vpack.c.b16 %v453, %v452
  %v525 = vpack.c.b16 %v455, %v454
  %v526 = vpack.c.b16 %v457, %v456
  %v527 = vpack.c.b16 %v459, %v458
  %v528 = vpack.c.b16 %v461, %v460
  %v529 = vpack.c.b16 %v463, %v462
  %v530 = vpack.c.b16 %v465, %v464
  %v531 = vpack.c.b16 %v467, %v466
  %596 = vmatprep.subr.bf16.mxu0 0
  %597 = vmatpush1.bf16.msra.mxu0 %v468
  %598 = vmatprep.subr.bf16.mxu0 0
  %599 = vmatpush1.bf16.msra.mxu0 %v469
  %600 = vmatprep.subr.bf16.mxu0 0
  %601 = vmatpush1.bf16.msra.mxu0 %v470
  %602 = vmatprep.subr.bf16.mxu0 0
  %603 = vmatpush1.bf16.msra.mxu0 %v471
  %604 = vmatprep.subr.bf16.mxu0 0
  %605 = vmatpush1.bf16.msra.mxu0 %v472
  %606 = vmatprep.subr.bf16.mxu0 0
  %607 = vmatpush1.bf16.msra.mxu0 %v473
  %608 = vmatprep.subr.bf16.mxu0 0
  %609 = vmatpush1.bf16.msra.mxu0 %v474
  %610 = vmatprep.subr.bf16.mxu0 0
  %611 = vmatpush1.bf16.msra.mxu0 %v475
  %612 = vmatprep.subr.bf16.mxu0 0
  %613 = vmatpush1.bf16.msra.mxu0 %v476
  %614 = vmatprep.subr.bf16.mxu0 0
  %615 = vmatpush1.bf16.msra.mxu0 %v477
  %616 = vmatprep.subr.bf16.mxu0 0
  %617 = vmatpush1.bf16.msra.mxu0 %v478
  %618 = vmatprep.subr.bf16.mxu0 0
  %619 = vmatpush1.bf16.msra.mxu0 %v479
  %620 = vmatprep.subr.bf16.mxu0 0
  %621 = vmatpush1.bf16.msra.mxu0 %v480
  %622 = vmatprep.subr.bf16.mxu0 0
  %623 = vmatpush1.bf16.msra.mxu0 %v481
  %624 = vmatprep.subr.bf16.mxu0 0
  %625 = vmatpush1.bf16.msra.mxu0 %v482
  %626 = vmatprep.subr.bf16.mxu0 0
  %627 = vmatpush1.bf16.msra.mxu0 %v483
  %628 = vmatprep.mubr.bf16.mxu0 %v197
  %629 = vmatmul.mubr.bf16.gmra.mrb[0].mxu0 %v196
  %v630 = vpop.f32.mrb[0].mxu0
  %v631 = vadd.f32 %v170, %v630
  %v632 = vpop.f32.mrb[0].mxu0
  %v633 = vpop.f32.mrb[0].mxu0
  %v634 = vadd.f32 %v170, %v633
  %v635 = vpop.f32.mrb[0].mxu0
  %636 = vdwg.mxu0
  %637 = vmatprep.subr.bf16.mxu0 0
  %638 = vmatpush1.bf16.msra.mxu0 %v484
  %639 = vmatprep.subr.bf16.mxu0 0
  %640 = vmatpush1.bf16.msra.mxu0 %v485
  %641 = vmatprep.subr.bf16.mxu0 0
  %642 = vmatpush1.bf16.msra.mxu0 %v486
  %643 = vmatprep.subr.bf16.mxu0 0
  %644 = vmatpush1.bf16.msra.mxu0 %v487
  %645 = vmatprep.subr.bf16.mxu0 0
  %646 = vmatpush1.bf16.msra.mxu0 %v488
  %647 = vmatprep.subr.bf16.mxu0 0
  %648 = vmatpush1.bf16.msra.mxu0 %v489
  %649 = vmatprep.subr.bf16.mxu0 0
  %650 = vmatpush1.bf16.msra.mxu0 %v490
  %651 = vmatprep.subr.bf16.mxu0 0
  %652 = vmatpush1.bf16.msra.mxu0 %v491
  %653 = vmatprep.subr.bf16.mxu0 0
  %654 = vmatpush1.bf16.msra.mxu0 %v492
  %655 = vmatprep.subr.bf16.mxu0 0
  %656 = vmatpush1.bf16.msra.mxu0 %v493
  %657 = vmatprep.subr.bf16.mxu0 0
  %658 = vmatpush1.bf16.msra.mxu0 %v494
  %659 = vmatprep.subr.bf16.mxu0 0
  %660 = vmatpush1.bf16.msra.mxu0 %v495
  %661 = vmatprep.subr.bf16.mxu0 0
  %662 = vmatpush1.bf16.msra.mxu0 %v496
  %663 = vmatprep.subr.bf16.mxu0 0
  %664 = vmatpush1.bf16.msra.mxu0 %v497
  %665 = vmatprep.subr.bf16.mxu0 0
  %666 = vmatpush1.bf16.msra.mxu0 %v498
  %667 = vmatprep.subr.bf16.mxu0 0
  %668 = vmatpush1.bf16.msra.mxu0 %v499
  %669 = vmatprep.mubr.bf16.mxu0 %v199
  %670 = vmatmul.mubr.bf16.gmra.mrb[0].mxu0 %v198
  %v671 = vpop.f32.mrb[0].mxu0
  %v672 = vadd.f32 %v631, %v671
  %v673 = vpop.f32.mrb[0].mxu0
  %v674 = vpop.f32.mrb[0].mxu0
  %v675 = vadd.f32 %v634, %v674
  %v676 = vpop.f32.mrb[0].mxu0
  %677 = vdwg.mxu0
  %678 = vmatprep.subr.bf16.mxu0 0
  %679 = vmatpush1.bf16.msra.mxu0 %v500
  %680 = vmatprep.subr.bf16.mxu0 0
  %681 = vmatpush1.bf16.msra.mxu0 %v501
  %682 = vmatprep.subr.bf16.mxu0 0
  %683 = vmatpush1.bf16.msra.mxu0 %v502
  %684 = vmatprep.subr.bf16.mxu0 0
  %685 = vmatpush1.bf16.msra.mxu0 %v503
  %686 = vmatprep.subr.bf16.mxu0 0
  %687 = vmatpush1.bf16.msra.mxu0 %v504
  %688 = vmatprep.subr.bf16.mxu0 0
  %689 = vmatpush1.bf16.msra.mxu0 %v505
  %690 = vmatprep.subr.bf16.mxu0 0
  %691 = vmatpush1.bf16.msra.mxu0 %v506
  %692 = vmatprep.subr.bf16.mxu0 0
  %693 = vmatpush1.bf16.msra.mxu0 %v507
  %694 = vmatprep.subr.bf16.mxu0 0
  %695 = vmatpush1.bf16.msra.mxu0 %v508
  %696 = vmatprep.subr.bf16.mxu0 0
  %697 = vmatpush1.bf16.msra.mxu0 %v509
  %698 = vmatprep.subr.bf16.mxu0 0
  %699 = vmatpush1.bf16.msra.mxu0 %v510
  %700 = vmatprep.subr.bf16.mxu0 0
  %701 = vmatpush1.bf16.msra.mxu0 %v511
  %702 = vmatprep.subr.bf16.mxu0 0
  %703 = vmatpush1.bf16.msra.mxu0 %v512
  %704 = vmatprep.subr.bf16.mxu0 0
  %705 = vmatpush1.bf16.msra.mxu0 %v513
  %706 = vmatprep.subr.bf16.mxu0 0
  %707 = vmatpush1.bf16.msra.mxu0 %v514
  %708 = vmatprep.subr.bf16.mxu0 0
  %709 = vmatpush1.bf16.msra.mxu0 %v515
  %710 = vmatprep.mubr.bf16.mxu0 %v201
  %711 = vmatmul.mubr.bf16.gmra.mrb[0].mxu0 %v200
  %v712 = vpop.f32.mrb[0].mxu0
  %v713 = vadd.f32 %v672, %v712
  %v714 = vpop.f32.mrb[0].mxu0
  %v715 = vpop.f32.mrb[0].mxu0
  %v716 = vadd.f32 %v675, %v715
  %v717 = vpop.f32.mrb[0].mxu0
  %718 = vdwg.mxu0
  %719 = vmatprep.subr.bf16.mxu0 0
  %720 = vmatpush1.bf16.msra.mxu0 %v516
  %721 = vmatprep.subr.bf16.mxu0 0
  %722 = vmatpush1.bf16.msra.mxu0 %v517
  %723 = vmatprep.subr.bf16.mxu0 0
  %724 = vmatpush1.bf16.msra.mxu0 %v518
  %725 = vmatprep.subr.bf16.mxu0 0
  %726 = vmatpush1.bf16.msra.mxu0 %v519
  %727 = vmatprep.subr.bf16.mxu0 0
  %728 = vmatpush1.bf16.msra.mxu0 %v520
  %729 = vmatprep.subr.bf16.mxu0 0
  %730 = vmatpush1.bf16.msra.mxu0 %v521
  %731 = vmatprep.subr.bf16.mxu0 0
  %732 = vmatpush1.bf16.msra.mxu0 %v522
  %733 = vmatprep.subr.bf16.mxu0 0
  %734 = vmatpush1.bf16.msra.mxu0 %v523
  %735 = vmatprep.subr.bf16.mxu0 0
  %736 = vmatpush1.bf16.msra.mxu0 %v524
  %737 = vmatprep.subr.bf16.mxu0 0
  %738 = vmatpush1.bf16.msra.mxu0 %v525
  %739 = vmatprep.subr.bf16.mxu0 0
  %740 = vmatpush1.bf16.msra.mxu0 %v526
  %741 = vmatprep.subr.bf16.mxu0 0
  %742 = vmatpush1.bf16.msra.mxu0 %v527
  %743 = vmatprep.subr.bf16.mxu0 0
  %744 = vmatpush1.bf16.msra.mxu0 %v528
  %745 = vmatprep.subr.bf16.mxu0 0
  %746 = vmatpush1.bf16.msra.mxu0 %v529
  %747 = vmatprep.subr.bf16.mxu0 0
  %748 = vmatpush1.bf16.msra.mxu0 %v530
  %749 = vmatprep.subr.bf16.mxu0 0
  %750 = vmatpush1.bf16.msra.mxu0 %v531
  %751 = vmatprep.mubr.bf16.mxu0 %v203
  %752 = vmatmul.mubr.bf16.gmra.mrb[0].mxu0 %v202
  %v753 = vpop.f32.mrb[0].mxu0
  %v754 = vadd.f32 %v713, %v753
  %v755 = vpop.f32.mrb[0].mxu0
  %v756 = vpop.f32.mrb[0].mxu0
  %v757 = vadd.f32 %v716, %v756
  %v758 = vpop.f32.mrb[0].mxu0
  %759 = vdwg.mxu0
  %v760 = vmax.f32 %v754, 0.0
  %v761 = vmax.f32 %v757, 0.0
  %v762 = vld [vmem:[%s3] sm:$0xff]
  %v763 = vld [vmem:[%s3 + $0x8] sm:$0xff]
  %v764 = vld [vmem:[%s3 + $0x10] sm:$0xff]
  %v765 = vld [vmem:[%s3 + $0x18] sm:$0xff]
  %v766 = vld [vmem:[%s4] sm:$0x1]
  %v768 = vlaneseq
  %v769 = vshrl.u32 %v768, 7
  %v770 = vsub.s32 0, %v769
  %v771 = vrot.slane %v766, %v770
  %vm773 = vcmask 261120
  %v775 = vsel %vm773, %v760, 0
  %v778 = vsel %vm773, %v761, 0
  %780 = vmatprep.subr.mxu0 0.0
  %781 = vmatpush1.msra.mxu0 %v762
  %782 = vmatprep.subr.mxu0 0.0
  %783 = vmatpush1.msra.mxu0 %v763
  %784 = vmatprep.subr.mxu0 0.0
  %785 = vmatpush1.msra.mxu0 %v764
  %786 = vmatprep.subr.mxu0 0.0
  %787 = vmatpush1.msra.mxu0 %v765
  %788 = vmatprep.subr.mxu0 0.0
  %789 = vmatpush1.msra.mxu0 0.0
  %790 = vmatprep.subr.mxu0 0.0
  %791 = vmatpush1.msra.mxu0 0.0
  %792 = vmatprep.subr.mxu0 0.0
  %793 = vmatpush1.msra.mxu0 0.0
  %794 = vmatprep.subr.mxu0 0.0
  %795 = vmatpush1.msra.mxu0 0.0
  %796 = vmatprep.subr.mxu0 0.0
  %797 = vmatpush1.msra.mxu0 0.0
  %798 = vmatprep.subr.mxu0 0.0
  %799 = vmatpush1.msra.mxu0 0.0
  %800 = vmatprep.subr.mxu0 0.0
  %801 = vmatpush1.msra.mxu0 0.0
  %802 = vmatprep.subr.mxu0 0.0
  %803 = vmatpush1.msra.mxu0 0.0
  %804 = vmatprep.subr.mxu0 0.0
  %805 = vmatpush1.msra.mxu0 0.0
  %806 = vmatprep.subr.mxu0 0.0
  %807 = vmatpush1.msra.mxu0 0.0
  %808 = vmatprep.subr.mxu0 0.0
  %809 = vmatpush1.msra.mxu0 0.0
  %810 = vmatprep.subr.mxu0 0.0
  %811 = vmatpush1.msra.mxu0 0.0
  %812 = vmatprep.subr.mxu0 0.0
  %813 = vmatpush1.msra.mxu0 0.0
  %814 = vmatprep.subr.mxu0 0.0
  %815 = vmatpush1.msra.mxu0 0.0
  %816 = vmatprep.subr.mxu0 0.0
  %817 = vmatpush1.msra.mxu0 0.0
  %818 = vmatprep.subr.mxu0 0.0
  %819 = vmatpush1.msra.mxu0 0.0
  %820 = vmatprep.subr.mxu0 0.0
  %821 = vmatpush1.msra.mxu0 0.0
  %822 = vmatprep.subr.mxu0 0.0
  %823 = vmatpush1.msra.mxu0 0.0
  %824 = vmatprep.subr.mxu0 0.0
  %825 = vmatpush1.msra.mxu0 0.0
  %826 = vmatprep.subr.mxu0 0.0
  %827 = vmatpush1.msra.mxu0 0.0
  %828 = vmatprep.subr.mxu0 0.0
  %829 = vmatpush1.msra.mxu0 0.0
  %830 = vmatprep.subr.mxu0 0.0
  %831 = vmatpush1.msra.mxu0 0.0
  %832 = vmatprep.subr.mxu0 0.0
  %833 = vmatpush1.msra.mxu0 0.0
  %834 = vmatprep.subr.mxu0 0.0
  %835 = vmatpush1.msra.mxu0 0.0
  %836 = vmatprep.subr.mxu0 0.0
  %837 = vmatpush1.msra.mxu0 0.0
  %838 = vmatprep.subr.mxu0 0.0
  %839 = vmatpush1.msra.mxu0 0.0
  %840 = vmatprep.subr.mxu0 0.0
  %841 = vmatpush1.msra.mxu0 0.0
  %842 = vmatprep.subr.mxu0 0.0
  %843 = vmatpush1.msra.mxu0 0.0
  %844 = vmatprep.mubr.f32.mxu0 0.0
  %845 = vmatmul.mubr.f32.gmra.mrb[0].mxu0 %v775
  %v846 = vpop.f32.mrb[0].mxu0
  %v847 = vadd.f32 %v771, %v846
  %v848 = vpop.f32.mrb[0].mxu0
  %849 = vmatprep.mubr.f32.mxu0 0.0
  %850 = vmatmul.mubr.f32.gmra.mrb[0].mxu0 %v778
  %v851 = vpop.f32.mrb[0].mxu0
  %v852 = vadd.f32 %v771, %v851
  %v853 = vpop.f32.mrb[0].mxu0
  %854 = vdwg.mxu0
  %v855 = vmax.f32 %v847, 0.0
  %v856 = vmax.f32 %v852, 0.0
  %v857 = vld [vmem:[%s5] sm:$0x1]
  %v859 = vlaneseq
  %v860 = vshrl.u32 %v859, 7
  %v861 = vsub.s32 0, %v860
  %v862 = vrot.slane %v857, %v861
  %v864 = vmul.f32 %v855, %v862
  %v865 = vmul.f32 %v856, %v862
  %v866 = vsel %vm773, %v864, 0.0
  %867 = vadd.xlane.f32.xlu0 %v866
  %v868 = vpop.xlane.xlu0 %867
  %v869 = vsel %vm773, %v865, 0.0
  %870 = vadd.xlane.f32.xlu0 %v869
  %v871 = vpop.xlane.xlu0 %870
  %v872 = vld [vmem:[#allocation2] sm:$0x1]
  %874 = vset.pattern.permute.xlu0 0
  %875 = vperm.xlu0 %874, %v872
  %v876 = vpop.permute.xlu0 %875
  %v878 = vlaneseq
  %v879 = vshrl.u32 %v878, 7
  %v880 = vsub.s32 0, %v879
  %v881 = vrot.slane %v876, %v880
  %v882 = vadd.f32 %v868, %v881
  %v883 = vadd.f32 %v871, %v881
  %v886 = vlaneseq
  %v887 = vand.u32 %v886, 127
  %v888 = vlaneseq
  %v889 = vshrl.u32 %v888, 7
  %v890 = vsub.s32 %v887, %v889
  %v891 = vrot.slane %v882, %v890
  %v892 = vadd.s32 %v887, 4294967288
  %v893 = vlaneseq
  %v894 = vshrl.u32 %v893, 7
  %v895 = vsub.s32 %v892, %v894
  %v896 = vrot.slane %v883, %v895
  %vm897 = vcmask 130112
  %v898 = vsel %vm897, %v896, %v891
  %vm900 = vcmask 122880
  %901 = vst.msk [vmem:[%s7] sm:$0x1] %vm900, %v898
  // Predicated region
  $region30: #{mlp_value_forward.1} parent=0 // pred_check
    _
  $region31: #{mlp_value_forward.1} parent=0 // pred_check_branch
    %903 = sbr.rel (0) target = $region33
  $region32: #{mlp_value_forward.1} parent=0 // pred_region
    _
  $region33: #{mlp_value_forward.1} parent=0 // pred_fallthru
    _
  // Predicated region
  $region34: #{mlp_value_forward.1} parent=0 // pred_check
    _
  $region35: #{mlp_value_forward.1} parent=0 // pred_check_branch
    %905 = sbr.rel (0) target = $region37
  $region36: #{mlp_value_forward.1} parent=0 // pred_region
    _
  $region37: #{mlp_value_forward.1} parent=0 // pred_fallthru
    _

</llo_original>
